<compile_context>
chip_gen: v7x
topology: tpu7x:2x2x1
jax: 0.10.0
libtpu: 0.0.40
codegen_flags: <defaults>
</compile_context>

<pallas_src>
import functools

import jax
import jax.numpy as jnp
import numpy as np
from jax.experimental import pallas as pl
from jax.experimental.pallas import tpu as pltpu

# ---------------- model hyper-params (small, deterministic) ----------------
INPUT_DIM = 32
HIDDEN_DIM = 64
OUTPUT_DIM = 32
NUM_LAYERS = 3
BATCH = 2
SEQ = 8

D_PAD = 128        # lane-pad every feature dim to a full vreg lane width
BIAS_ROWS = 16     # bias segment rows (bf16 sublane tile) -> segments tile-aligned
MAX_ROW_TILE = 512


def _round_up(a, b):
    return (a + b - 1) // b * b


# ------------------------------- kernel ------------------------------------
def mlp_kernel(x_ref, p_ref, o_ref, *, num_layers, d_pad, bias_rows):
    """x_ref: (row_tile, d_pad) bf16.  p_ref: packed param slab, bf16.
    Slab layout per layer i (rows): [d_pad rows of W^T | bias_rows rows, bias in row 0]."""
    h = x_ref[...]                                         # bf16 activations
    seg = d_pad + bias_rows
    for i in range(num_layers):                            # unrolled at trace time
        off = i * seg                                      # static offsets -> free slices
        w = p_ref[off:off + d_pad, :]                      # (d_pad, d_pad) bf16, = W_i^T padded
        b = p_ref[off + d_pad:off + d_pad + 1, :]          # (1, d_pad) bf16
        acc = jnp.dot(h, w, preferred_element_type=jnp.float32)   # MXU, f32 accum
        acc = acc + b.astype(jnp.float32)
        if i < num_layers - 1:
            h = jnp.maximum(acc, 0.0).astype(jnp.bfloat16)  # ReLU in f32, recast for MXU
        else:
            o_ref[...] = acc.astype(o_ref.dtype)


# ------------------------------ wrapper -------------------------------------
def pack_param_slab(weights, biases, d_pad=D_PAD, bias_rows=BIAS_ROWS):
    """weights[i]: torch-style (d_out, d_in); biases[i]: (d_out,).
    Packs all layers into one (num_layers*(d_pad+bias_rows), d_pad) bf16 slab."""
    segs = []
    for w, b in zip(weights, biases):
        d_out, d_in = w.shape
        w_seg = jnp.zeros((d_pad, d_pad), jnp.bfloat16)
        w_seg = w_seg.at[:d_in, :d_out].set(w.T.astype(jnp.bfloat16))   # x @ W.T layout
        b_seg = jnp.zeros((bias_rows, d_pad), jnp.bfloat16)
        b_seg = b_seg.at[0, :d_out].set(b.astype(jnp.bfloat16))
        segs.append(w_seg)
        segs.append(b_seg)
    return jnp.concatenate(segs, axis=0)


def mlp_forward(x, param_slab, num_layers, out_dim):
    """x: (..., input_dim) f32. Returns (..., out_dim) f32."""
    in_dim = x.shape[-1]
    lead = x.shape[:-1]
    x2d = x.reshape(-1, in_dim)
    n_rows = x2d.shape[0]

    row_tile = min(MAX_ROW_TILE, _round_up(max(n_rows, 1), 16))
    n_pad = _round_up(n_rows, row_tile)
    grid = (n_pad // row_tile,)

    # Lane-pad features to 128, sublane-pad rows to the tile; padded entries = 0.
    x_pad = jnp.zeros((n_pad, D_PAD), jnp.bfloat16)
    x_pad = x_pad.at[:n_rows, :in_dim].set(x2d.astype(jnp.bfloat16))

    kernel = functools.partial(mlp_kernel, num_layers=num_layers,
                               d_pad=D_PAD, bias_rows=BIAS_ROWS)

    out_pad = pl.pallas_call(
        kernel,
        out_shape=jax.ShapeDtypeStruct((n_pad, D_PAD), jnp.float32),
        grid=grid,
        in_specs=[
            pl.BlockSpec((row_tile, D_PAD), lambda i: (i, 0)),        # row tile of x
            pl.BlockSpec(param_slab.shape, lambda i: (0, 0)),         # slab resident across tiles
        ],
        out_specs=pl.BlockSpec((row_tile, D_PAD), lambda i: (i, 0)),
        compiler_params=pltpu.CompilerParams(
            dimension_semantics=("parallel",)),                       # v7x: both TCs
    )(x_pad, param_slab)

    return out_pad[:n_rows, :out_dim].reshape(*lead, out_dim)


# --------------------------- references -------------------------------------
def reference_forward_f32(x, weights, biases):
    h = x
    for i, (w, b) in enumerate(zip(weights, biases)):
        h = h @ w.T + b
        if i < len(weights) - 1:
            h = jnp.maximum(h, 0.0)
    return h


def reference_forward_bf16(x, weights, biases):
    """Same math as the kernel: bf16 operands, f32 accumulation."""
    h = x.astype(jnp.bfloat16)
    for i, (w, b) in enumerate(zip(weights, biases)):
        h = jnp.dot(h, w.T.astype(jnp.bfloat16),
                    preferred_element_type=jnp.float32)
        h = h + b.astype(jnp.bfloat16).astype(jnp.float32)
        if i < len(weights) - 1:
            h = jnp.maximum(h, 0.0).astype(jnp.bfloat16)
    return h


def make_params(key):
    dims = [INPUT_DIM] + [HIDDEN_DIM] * (NUM_LAYERS - 1) + [OUTPUT_DIM]
    weights, biases = [], []
    ks = jax.random.split(key, 2 * NUM_LAYERS)
    for i in range(NUM_LAYERS):
        d_in, d_out = dims[i], dims[i + 1]
        s = 1.0 / np.sqrt(d_in)
        # torch nn.Linear layout: W (d_out, d_in), b (d_out,)
        weights.append(jax.random.uniform(ks[2 * i], (d_out, d_in),
                                          jnp.float32, -s, s))
        biases.append(jax.random.uniform(ks[2 * i + 1], (d_out,),
                                         jnp.float32, -s, s))
    return weights, biases


if __name__ == "__main__":
    key = jax.random.PRNGKey(0)
    k_x, k_p = jax.random.split(key, 2)
    x = jax.random.normal(k_x, (BATCH, SEQ, INPUT_DIM), jnp.float32)
    weights, biases = make_params(k_p)
    slab = pack_param_slab(weights, biases)

    out = mlp_forward(x, slab, NUM_LAYERS, OUTPUT_DIM)
    out = jax.block_until_ready(out)

    # Tight check vs. a reference using the identical bf16/f32-accum math.
    ref_bf16 = reference_forward_bf16(x, weights, biases)
    np.testing.assert_allclose(np.asarray(out), np.asarray(ref_bf16),
                               rtol=1e-3, atol=1e-3)
    # Loose sanity check vs. the original f32 module semantics (bf16 rounding).
    ref_f32 = reference_forward_f32(x, weights, biases)
    np.testing.assert_allclose(np.asarray(out), np.asarray(ref_f32),
                               rtol=5e-2, atol=5e-2)
    print("KERNEL_OK")
</pallas_src>

<mosaic_0001>
module attributes {stable_mosaic.version = 11 : i64} {
  func.func @mlp_kernel(%arg0: i32, %arg1: memref<16x128xbf16, #tpu.memory_space<vmem>>, %arg2: memref<432x128xbf16, #tpu.memory_space<vmem>>, %arg3: memref<16x128xf32, #tpu.memory_space<vmem>>) attributes {dimension_semantics = [#tpu.dimension_semantics<parallel>], iteration_bounds = array<i64: 1>, scalar_prefetch = 0 : i64, scratch_operands = 0 : i64, tpu.core_type = #tpu.core_type<tc>, window_params = [{transform_indices = @transform_0, window_bounds = array<i64: 16, 128>}, {pipeline_mode = #tpu.pipeline_mode<synchronous>, transform_indices = @transform_1, window_bounds = array<i64: 432, 128>}, {transform_indices = @transform_2, window_bounds = array<i64: 16, 128>}]} {
    %c0 = arith.constant 0 : index
    %c0_0 = arith.constant 0 : index
    %0 = vector.load %arg1[%c0, %c0_0] : memref<16x128xbf16, #tpu.memory_space<vmem>>, vector<16x128xbf16>
    %c0_1 = arith.constant 0 : index
    %c0_2 = arith.constant 0 : index
    %1 = vector.load %arg2[%c0_1, %c0_2] : memref<432x128xbf16, #tpu.memory_space<vmem>>, vector<128x128xbf16>
    %c128 = arith.constant 128 : index
    %c0_3 = arith.constant 0 : index
    %2 = vector.load %arg2[%c128, %c0_3] : memref<432x128xbf16, #tpu.memory_space<vmem>>, vector<1x128xbf16>
    %cst = arith.constant dense<0.000000e+00> : vector<16x128xf32>
    %3 = tpu.matmul %0, %1, %cst {dimension_numbers = #tpu.dot_dimension_numbers<[1], [0], [0], [1], [0, 0, 1, 1], [], []>} : vector<16x128xbf16>, vector<128x128xbf16>, vector<16x128xf32> -> vector<16x128xf32>
    %4 = arith.extf %2 : vector<1x128xbf16> to vector<1x128xf32>
    %5 = vector.broadcast %4 : vector<1x128xf32> to vector<16x128xf32>
    %6 = arith.addf %3, %5 : vector<16x128xf32>
    %cst_4 = arith.constant 0.000000e+00 : f32
    %7 = vector.broadcast %cst_4 : f32 to vector<16x128xf32>
    %8 = arith.maximumf %6, %7 : vector<16x128xf32>
    %9 = arith.truncf %8 : vector<16x128xf32> to vector<16x128xbf16>
    %c144 = arith.constant 144 : index
    %c0_5 = arith.constant 0 : index
    %10 = vector.load %arg2[%c144, %c0_5] : memref<432x128xbf16, #tpu.memory_space<vmem>>, vector<128x128xbf16>
    %c272 = arith.constant 272 : index
    %c0_6 = arith.constant 0 : index
    %11 = vector.load %arg2[%c272, %c0_6] : memref<432x128xbf16, #tpu.memory_space<vmem>>, vector<1x128xbf16>
    %cst_7 = arith.constant dense<0.000000e+00> : vector<16x128xf32>
    %12 = tpu.matmul %9, %10, %cst_7 {dimension_numbers = #tpu.dot_dimension_numbers<[1], [0], [0], [1], [0, 0, 1, 1], [], []>} : vector<16x128xbf16>, vector<128x128xbf16>, vector<16x128xf32> -> vector<16x128xf32>
    %13 = arith.extf %11 : vector<1x128xbf16> to vector<1x128xf32>
    %14 = vector.broadcast %13 : vector<1x128xf32> to vector<16x128xf32>
    %15 = arith.addf %12, %14 : vector<16x128xf32>
    %cst_8 = arith.constant 0.000000e+00 : f32
    %16 = vector.broadcast %cst_8 : f32 to vector<16x128xf32>
    %17 = arith.maximumf %15, %16 : vector<16x128xf32>
    %18 = arith.truncf %17 : vector<16x128xf32> to vector<16x128xbf16>
    %c288 = arith.constant 288 : index
    %c0_9 = arith.constant 0 : index
    %19 = vector.load %arg2[%c288, %c0_9] : memref<432x128xbf16, #tpu.memory_space<vmem>>, vector<128x128xbf16>
    %c416 = arith.constant 416 : index
    %c0_10 = arith.constant 0 : index
    %20 = vector.load %arg2[%c416, %c0_10] : memref<432x128xbf16, #tpu.memory_space<vmem>>, vector<1x128xbf16>
    %cst_11 = arith.constant dense<0.000000e+00> : vector<16x128xf32>
    %21 = tpu.matmul %18, %19, %cst_11 {dimension_numbers = #tpu.dot_dimension_numbers<[1], [0], [0], [1], [0, 0, 1, 1], [], []>} : vector<16x128xbf16>, vector<128x128xbf16>, vector<16x128xf32> -> vector<16x128xf32>
    %22 = arith.extf %20 : vector<1x128xbf16> to vector<1x128xf32>
    %23 = vector.broadcast %22 : vector<1x128xf32> to vector<16x128xf32>
    %24 = arith.addf %21, %23 : vector<16x128xf32>
    %c0_12 = arith.constant 0 : index
    %c0_13 = arith.constant 0 : index
    %25 = vector.load %arg3[%c0_12, %c0_13] : memref<16x128xf32, #tpu.memory_space<vmem>>, vector<16x128xf32>
    tpu.vector_store %arg3[%c0_12, %c0_13], %24 {strides = array<i32>} : memref<16x128xf32, #tpu.memory_space<vmem>>, vector<16x128xf32>,
    return
  }
  func.func @transform_0(%arg0: i32) -> (i32, i32) {
    %c0_i32 = arith.constant 0 : i32
    %c0_i32_0 = arith.constant 0 : i32
    return %arg0, %c0_i32 : i32, i32
  }
  func.func @transform_1(%arg0: i32) -> (i32, i32) {
    %c0_i32 = arith.constant 0 : i32
    %c0_i32_0 = arith.constant 0 : i32
    %c0_i32_1 = arith.constant 0 : i32
    return %c0_i32, %c0_i32_0 : i32, i32
  }
  func.func @transform_2(%arg0: i32) -> (i32, i32) {
    %c0_i32 = arith.constant 0 : i32
    %c0_i32_0 = arith.constant 0 : i32
    return %arg0, %c0_i32 : i32, i32
  }
}

</mosaic_0001>

<llo_original>
// kernel: tpu_custom_call.1
$region0: #{tpu_custom_call.1}
  #allocation0 [shape = 'u32[]', space=smem, size = 0x4, offset = 0x4, fixed_abs, tag = 'smem constant byte address 0x4 - core index']
  #allocation1 [shape = 'u32[144,128]{1,0:T(1,128)}', space=vmem, size = 0x12000, scoped, tag = 'internal scratch']
  %s0 = inlined_call_operand.hbm [shape: bf16[16,128], index: 0, kind: input, shape index: {}]
  %s1 = inlined_call_operand.hbm [shape: bf16[432,128], index: 1, kind: input, shape index: {}]
  %s2 = inlined_call_operand.hbm [shape: f32[16,128], index: 2, kind: output, shape index: {}]
  %s3 = sld [smem:[#allocation0]]
  $region26: #{tpu_custom_call.1} parent=0
    _
  %s5 = ssub.s32 1, %s3
  %s6 = scalar_select 0, %s5, %s3
  $region1: #{tpu_custom_call.1} parent=0
    #allocation2 [shape = 'u8[4096]{0}', space=vmem, size = 0x1000, scoped, tag = 'input window, operand 0, single buffered']
    #allocation3 [shape = 's32[1]{0}', space=sflag, size = 0x4, scoped, tag = 'scoped memory for tpu_custom_call.1']
    #allocation4 [shape = 's32[1]{0}', space=sflag, size = 0x4, scoped, tag = 'scoped memory for tpu_custom_call.1']
    #allocation5 [shape = 'u8[110592]{0}', space=vmem, size = 0x1b000, scoped, tag = 'input window, operand 1, single buffered']
    #allocation6 [shape = 's32[1]{0}', space=sflag, size = 0x4, scoped, tag = 'scoped memory for tpu_custom_call.1']
    #allocation7 [shape = 'u8[8192]{0}', space=vmem, size = 0x2000, scoped, tag = 'output window, operand 0, single buffered']
    %7 = vsyncpa [#allocation3], 0
    %8 = vsyncpa [#allocation6], 0
    %9 = vsyncpa [#allocation4], 0
    // Predicated region
    $region2: #{tpu_custom_call.1} parent=1 // pred_check
      _
    $region3: #{tpu_custom_call.1} parent=1 // pred_check_branch
      %11 = sbr.rel (0) target = $region5
    $region4: #{tpu_custom_call.1} parent=1 // pred_region
      %s13 = ssub.s32 128, 128
      %14 = vsyncadd [#allocation3], %s13
      %s15 = sshll.u32 [#allocation2], 4
      %s16 = int_to_ptr.vmem [resolvable:$true] %s15
      %21 = dma.hbm_to_vmem [thread:$0]  %s0, 128, %s16, [#allocation3], 64, 64, 4
    $region5: #{tpu_custom_call.1} parent=1 // pred_fallthru
      _
    // Predicated region
    $region6: #{tpu_custom_call.1} parent=1 // pred_check
      _
    $region7: #{tpu_custom_call.1} parent=1 // pred_check_branch
      %23 = sbr.rel (0) target = $region9
    $region8: #{tpu_custom_call.1} parent=1 // pred_region
      %s25 = ssub.s32 3456, 3456
      %26 = vsyncadd [#allocation6], %s25
      %s27 = sshll.u32 [#allocation5], 4
      %s28 = int_to_ptr.vmem [resolvable:$true] %s27
      %33 = dma.hbm_to_vmem [thread:$0]  %s1, 3456, %s28, [#allocation6], 64, 64, 4
    $region9: #{tpu_custom_call.1} parent=1 // pred_fallthru
      _
    // Predicated region
    $region10: #{tpu_custom_call.1} parent=1 // pred_check
      _
    $region11: #{tpu_custom_call.1} parent=1 // pred_check_branch
      %35 = sbr.rel (0) target = $region13
    $region12: #{tpu_custom_call.1} parent=1 // pred_region
      %36 = dma.done [#allocation3], 128
    $region13: #{tpu_custom_call.1} parent=1 // pred_fallthru
      _
    // Predicated region
    $region14: #{tpu_custom_call.1} parent=1 // pred_check
      _
    $region15: #{tpu_custom_call.1} parent=1 // pred_check_branch
      %38 = sbr.rel (0) target = $region17
    $region16: #{tpu_custom_call.1} parent=1 // pred_region
      %39 = dma.done [#allocation6], 3456
    $region17: #{tpu_custom_call.1} parent=1 // pred_fallthru
      _
    %v41 = vld [vmem:[#allocation2] sm:$0xf]
    %v42 = vld [vmem:[#allocation2 + $0x4] sm:$0xf]
    %v43 = vld [vmem:[#allocation5] sm:$0xf]
    %v44 = vld [vmem:[#allocation5 + $0x4] sm:$0xf]
    %v45 = vld [vmem:[#allocation5 + $0x8] sm:$0xf]
    %v46 = vld [vmem:[#allocation5 + $0xc] sm:$0xf]
    %v47 = vld [vmem:[#allocation5 + $0x10] sm:$0xf]
    %v48 = vld [vmem:[#allocation5 + $0x14] sm:$0xf]
    %v49 = vld [vmem:[#allocation5 + $0x18] sm:$0xf]
    %v50 = vld [vmem:[#allocation5 + $0x1c] sm:$0xf]
    %v51 = vld [vmem:[#allocation5 + $0x20] sm:$0xf]
    %v52 = vld [vmem:[#allocation5 + $0x24] sm:$0xf]
    %v53 = vld [vmem:[#allocation5 + $0x28] sm:$0xf]
    %v54 = vld [vmem:[#allocation5 + $0x2c] sm:$0xf]
    %v55 = vld [vmem:[#allocation5 + $0x30] sm:$0xf]
    %v56 = vld [vmem:[#allocation5 + $0x34] sm:$0xf]
    %v57 = vld [vmem:[#allocation5 + $0x38] sm:$0xf]
    %v58 = vld [vmem:[#allocation5 + $0x3c] sm:$0xf]
    %v59 = vld [vmem:[#allocation5 + $0x40] sm:$0x1]
    %v60 = vunpack.c.l.bf16 %v59
    %v61 = vlaneseq
    %v62 = vshrl.u32 %v61, 7
    %v63 = vsub.s32 0, %v62
    %v64 = vrot.slane %v60, %v63
    %v67 = vunpack.c.l.b16 %v41
    %v68 = vunpack.c.l.b16 %v42
    %v69 = vpack.c.b16 %v68, %v67
    %v87 = vunpack.c.l.b16 %v43
    %v88 = vunpack.c.l.b16 %v44
    %v89 = vunpack.c.l.b16 %v45
    %v90 = vunpack.c.l.b16 %v46
    %v91 = vunpack.c.l.b16 %v47
    %v92 = vunpack.c.l.b16 %v48
    %v93 = vunpack.c.l.b16 %v49
    %v94 = vunpack.c.l.b16 %v50
    %v95 = vunpack.c.l.b16 %v51
    %v96 = vunpack.c.l.b16 %v52
    %v97 = vunpack.c.l.b16 %v53
    %v98 = vunpack.c.l.b16 %v54
    %v99 = vunpack.c.l.b16 %v55
    %v100 = vunpack.c.l.b16 %v56
    %v101 = vunpack.c.l.b16 %v57
    %v102 = vunpack.c.l.b16 %v58
    %v103 = vpack.c.b16 %v88, %v87
    %v104 = vpack.c.b16 %v90, %v89
    %v105 = vpack.c.b16 %v92, %v91
    %v106 = vpack.c.b16 %v94, %v93
    %v107 = vpack.c.b16 %v96, %v95
    %v108 = vpack.c.b16 %v98, %v97
    %v109 = vpack.c.b16 %v100, %v99
    %v110 = vpack.c.b16 %v102, %v101
    %119 = vmatprep.subr.bf16.mxu0 0
    %120 = vmatpush1.bf16.msra.mxu0 %v103
    %121 = vmatprep.subr.bf16.mxu0 0
    %122 = vmatpush1.bf16.msra.mxu0 %v104
    %123 = vmatprep.subr.bf16.mxu0 0
    %124 = vmatpush1.bf16.msra.mxu0 %v105
    %125 = vmatprep.subr.bf16.mxu0 0
    %126 = vmatpush1.bf16.msra.mxu0 %v106
    %127 = vmatprep.subr.bf16.mxu0 0
    %128 = vmatpush1.bf16.msra.mxu0 %v107
    %129 = vmatprep.subr.bf16.mxu0 0
    %130 = vmatpush1.bf16.msra.mxu0 %v108
    %131 = vmatprep.subr.bf16.mxu0 0
    %132 = vmatpush1.bf16.msra.mxu0 %v109
    %133 = vmatprep.subr.bf16.mxu0 0
    %134 = vmatpush1.bf16.msra.mxu0 %v110
    %135 = vmatprep.subr.bf16.mxu0 0
    %136 = vmatpush1.bf16.msra.mxu0 0
    %137 = vmatprep.subr.bf16.mxu0 0
    %138 = vmatpush1.bf16.msra.mxu0 0
    %139 = vmatprep.subr.bf16.mxu0 0
    %140 = vmatpush1.bf16.msra.mxu0 0
    %141 = vmatprep.subr.bf16.mxu0 0
    %142 = vmatpush1.bf16.msra.mxu0 0
    %143 = vmatprep.subr.bf16.mxu0 0
    %144 = vmatpush1.bf16.msra.mxu0 0
    %145 = vmatprep.subr.bf16.mxu0 0
    %146 = vmatpush1.bf16.msra.mxu0 0
    %147 = vmatprep.subr.bf16.mxu0 0
    %148 = vmatpush1.bf16.msra.mxu0 0
    %149 = vmatprep.subr.bf16.mxu0 0
    %150 = vmatpush1.bf16.msra.mxu0 0
    %151 = vmatprep.mubr.bf16.mxu0 0
    %152 = vmatmul.mubr.bf16.gmra.mrb[0].mxu0 %v69
    %v153 = vpop.f32.mrb[0].mxu0
    %v154 = vadd.f32 %v64, %v153
    %v155 = vpop.f32.mrb[0].mxu0
    %v156 = vpop.f32.mrb[0].mxu0
    %v157 = vadd.f32 %v64, %v156
    %v158 = vpop.f32.mrb[0].mxu0
    %159 = vdwg.mxu0
    %v160 = vmax.f32 %v154, 0.0
    %v161 = vmax.f32 %v157, 0.0
    %v162 = vpack.c.bf16 %v161, %v160
    %v163 = vld [vmem:[#allocation5 + $0x48] sm:$0xf]
    %v164 = vld [vmem:[#allocation5 + $0x4c] sm:$0xf]
    %v165 = vld [vmem:[#allocation5 + $0x50] sm:$0xf]
    %v166 = vld [vmem:[#allocation5 + $0x54] sm:$0xf]
    %v167 = vld [vmem:[#allocation5 + $0x58] sm:$0xf]
    %v168 = vld [vmem:[#allocation5 + $0x5c] sm:$0xf]
    %v169 = vld [vmem:[#allocation5 + $0x60] sm:$0xf]
    %v170 = vld [vmem:[#allocation5 + $0x64] sm:$0xf]
    %v171 = vld [vmem:[#allocation5 + $0x68] sm:$0xf]
    %v172 = vld [vmem:[#allocation5 + $0x6c] sm:$0xf]
    %v173 = vld [vmem:[#allocation5 + $0x70] sm:$0xf]
    %v174 = vld [vmem:[#allocation5 + $0x74] sm:$0xf]
    %v175 = vld [vmem:[#allocation5 + $0x78] sm:$0xf]
    %v176 = vld [vmem:[#allocation5 + $0x7c] sm:$0xf]
    %v177 = vld [vmem:[#allocation5 + $0x80] sm:$0xf]
    %v178 = vld [vmem:[#allocation5 + $0x84] sm:$0xf]
    %v179 = vld [vmem:[#allocation5 + $0x88] sm:$0x1]
    %v180 = vunpack.c.l.bf16 %v179
    %v181 = vlaneseq
    %v182 = vshrl.u32 %v181, 7
    %v183 = vsub.s32 0, %v182
    %v184 = vrot.slane %v180, %v183
    %v201 = vunpack.c.l.b16 %v163
    %v202 = vunpack.c.l.b16 %v164
    %v203 = vunpack.c.l.b16 %v165
    %v204 = vunpack.c.l.b16 %v166
    %v205 = vunpack.c.l.b16 %v167
    %v206 = vunpack.c.l.b16 %v168
    %v207 = vunpack.c.l.b16 %v169
    %v208 = vunpack.c.l.b16 %v170
    %v209 = vunpack.c.l.b16 %v171
    %v210 = vunpack.c.l.b16 %v172
    %v211 = vunpack.c.l.b16 %v173
    %v212 = vunpack.c.l.b16 %v174
    %v213 = vunpack.c.l.b16 %v175
    %v214 = vunpack.c.l.b16 %v176
    %v215 = vunpack.c.l.b16 %v177
    %v216 = vunpack.c.l.b16 %v178
    %v217 = vpack.c.b16 %v202, %v201
    %v218 = vpack.c.b16 %v204, %v203
    %v219 = vpack.c.b16 %v206, %v205
    %v220 = vpack.c.b16 %v208, %v207
    %v221 = vpack.c.b16 %v210, %v209
    %v222 = vpack.c.b16 %v212, %v211
    %v223 = vpack.c.b16 %v214, %v213
    %v224 = vpack.c.b16 %v216, %v215
    %233 = vmatprep.subr.bf16.mxu0 0
    %234 = vmatpush1.bf16.msra.mxu0 %v217
    %235 = vmatprep.subr.bf16.mxu0 0
    %236 = vmatpush1.bf16.msra.mxu0 %v218
    %237 = vmatprep.subr.bf16.mxu0 0
    %238 = vmatpush1.bf16.msra.mxu0 %v219
    %239 = vmatprep.subr.bf16.mxu0 0
    %240 = vmatpush1.bf16.msra.mxu0 %v220
    %241 = vmatprep.subr.bf16.mxu0 0
    %242 = vmatpush1.bf16.msra.mxu0 %v221
    %243 = vmatprep.subr.bf16.mxu0 0
    %244 = vmatpush1.bf16.msra.mxu0 %v222
    %245 = vmatprep.subr.bf16.mxu0 0
    %246 = vmatpush1.bf16.msra.mxu0 %v223
    %247 = vmatprep.subr.bf16.mxu0 0
    %248 = vmatpush1.bf16.msra.mxu0 %v224
    %249 = vmatprep.subr.bf16.mxu0 0
    %250 = vmatpush1.bf16.msra.mxu0 0
    %251 = vmatprep.subr.bf16.mxu0 0
    %252 = vmatpush1.bf16.msra.mxu0 0
    %253 = vmatprep.subr.bf16.mxu0 0
    %254 = vmatpush1.bf16.msra.mxu0 0
    %255 = vmatprep.subr.bf16.mxu0 0
    %256 = vmatpush1.bf16.msra.mxu0 0
    %257 = vmatprep.subr.bf16.mxu0 0
    %258 = vmatpush1.bf16.msra.mxu0 0
    %259 = vmatprep.subr.bf16.mxu0 0
    %260 = vmatpush1.bf16.msra.mxu0 0
    %261 = vmatprep.subr.bf16.mxu0 0
    %262 = vmatpush1.bf16.msra.mxu0 0
    %263 = vmatprep.subr.bf16.mxu0 0
    %264 = vmatpush1.bf16.msra.mxu0 0
    %265 = vmatprep.mubr.bf16.mxu0 0
    %266 = vmatmul.mubr.bf16.gmra.mrb[0].mxu0 %v162
    %v267 = vpop.f32.mrb[0].mxu0
    %v268 = vadd.f32 %v184, %v267
    %v269 = vpop.f32.mrb[0].mxu0
    %v270 = vpop.f32.mrb[0].mxu0
    %v271 = vadd.f32 %v184, %v270
    %v272 = vpop.f32.mrb[0].mxu0
    %273 = vdwg.mxu0
    %v274 = vmax.f32 %v268, 0.0
    %v275 = vmax.f32 %v271, 0.0
    %v276 = vpack.c.bf16 %v275, %v274
    %v277 = vld [vmem:[#allocation5 + $0x90] sm:$0xf]
    %v278 = vld [vmem:[#allocation5 + $0x94] sm:$0xf]
    %v279 = vld [vmem:[#allocation5 + $0x98] sm:$0xf]
    %v280 = vld [vmem:[#allocation5 + $0x9c] sm:$0xf]
    %v281 = vld [vmem:[#allocation5 + $0xa0] sm:$0xf]
    %v282 = vld [vmem:[#allocation5 + $0xa4] sm:$0xf]
    %v283 = vld [vmem:[#allocation5 + $0xa8] sm:$0xf]
    %v284 = vld [vmem:[#allocation5 + $0xac] sm:$0xf]
    %v285 = vld [vmem:[#allocation5 + $0xb0] sm:$0xf]
    %v286 = vld [vmem:[#allocation5 + $0xb4] sm:$0xf]
    %v287 = vld [vmem:[#allocation5 + $0xb8] sm:$0xf]
    %v288 = vld [vmem:[#allocation5 + $0xbc] sm:$0xf]
    %v289 = vld [vmem:[#allocation5 + $0xc0] sm:$0xf]
    %v290 = vld [vmem:[#allocation5 + $0xc4] sm:$0xf]
    %v291 = vld [vmem:[#allocation5 + $0xc8] sm:$0xf]
    %v292 = vld [vmem:[#allocation5 + $0xcc] sm:$0xf]
    %v293 = vld [vmem:[#allocation5 + $0xd0] sm:$0x1]
    %v294 = vunpack.c.l.bf16 %v293
    %v295 = vlaneseq
    %v296 = vshrl.u32 %v295, 7
    %v297 = vsub.s32 0, %v296
    %v298 = vrot.slane %v294, %v297
    %v315 = vunpack.c.l.b16 %v277
    %v316 = vunpack.c.l.b16 %v278
    %v317 = vunpack.c.l.b16 %v279
    %v318 = vunpack.c.l.b16 %v280
    %v319 = vunpack.c.l.b16 %v281
    %v320 = vunpack.c.l.b16 %v282
    %v321 = vunpack.c.l.b16 %v283
    %v322 = vunpack.c.l.b16 %v284
    %v323 = vunpack.c.l.b16 %v285
    %v324 = vunpack.c.l.b16 %v286
    %v325 = vunpack.c.l.b16 %v287
    %v326 = vunpack.c.l.b16 %v288
    %v327 = vunpack.c.l.b16 %v289
    %v328 = vunpack.c.l.b16 %v290
    %v329 = vunpack.c.l.b16 %v291
    %v330 = vunpack.c.l.b16 %v292
    %v331 = vpack.c.b16 %v316, %v315
    %v332 = vpack.c.b16 %v318, %v317
    %v333 = vpack.c.b16 %v320, %v319
    %v334 = vpack.c.b16 %v322, %v321
    %v335 = vpack.c.b16 %v324, %v323
    %v336 = vpack.c.b16 %v326, %v325
    %v337 = vpack.c.b16 %v328, %v327
    %v338 = vpack.c.b16 %v330, %v329
    %347 = vmatprep.subr.bf16.mxu0 0
    %348 = vmatpush1.bf16.msra.mxu0 %v331
    %349 = vmatprep.subr.bf16.mxu0 0
    %350 = vmatpush1.bf16.msra.mxu0 %v332
    %351 = vmatprep.subr.bf16.mxu0 0
    %352 = vmatpush1.bf16.msra.mxu0 %v333
    %353 = vmatprep.subr.bf16.mxu0 0
    %354 = vmatpush1.bf16.msra.mxu0 %v334
    %355 = vmatprep.subr.bf16.mxu0 0
    %356 = vmatpush1.bf16.msra.mxu0 %v335
    %357 = vmatprep.subr.bf16.mxu0 0
    %358 = vmatpush1.bf16.msra.mxu0 %v336
    %359 = vmatprep.subr.bf16.mxu0 0
    %360 = vmatpush1.bf16.msra.mxu0 %v337
    %361 = vmatprep.subr.bf16.mxu0 0
    %362 = vmatpush1.bf16.msra.mxu0 %v338
    %363 = vmatprep.subr.bf16.mxu0 0
    %364 = vmatpush1.bf16.msra.mxu0 0
    %365 = vmatprep.subr.bf16.mxu0 0
    %366 = vmatpush1.bf16.msra.mxu0 0
    %367 = vmatprep.subr.bf16.mxu0 0
    %368 = vmatpush1.bf16.msra.mxu0 0
    %369 = vmatprep.subr.bf16.mxu0 0
    %370 = vmatpush1.bf16.msra.mxu0 0
    %371 = vmatprep.subr.bf16.mxu0 0
    %372 = vmatpush1.bf16.msra.mxu0 0
    %373 = vmatprep.subr.bf16.mxu0 0
    %374 = vmatpush1.bf16.msra.mxu0 0
    %375 = vmatprep.subr.bf16.mxu0 0
    %376 = vmatpush1.bf16.msra.mxu0 0
    %377 = vmatprep.subr.bf16.mxu0 0
    %378 = vmatpush1.bf16.msra.mxu0 0
    %379 = vmatprep.mubr.bf16.mxu0 0
    %380 = vmatmul.mubr.bf16.gmra.mrb[0].mxu0 %v276
    %v381 = vpop.f32.mrb[0].mxu0
    %v382 = vadd.f32 %v298, %v381
    %v383 = vpop.f32.mrb[0].mxu0
    %v384 = vpop.f32.mrb[0].mxu0
    %v385 = vadd.f32 %v298, %v384
    %v386 = vpop.f32.mrb[0].mxu0
    %387 = vdwg.mxu0
    %388 = vst [vmem:[#allocation7] sm:$0xff] %v382
    %389 = vst [vmem:[#allocation7 + $0x8] sm:$0xff] %v385
    // Predicated region
    $region18: #{tpu_custom_call.1} parent=1 // pred_check
      _
    $region19: #{tpu_custom_call.1} parent=1 // pred_check_branch
      %391 = sbr.rel (0) target = $region21
    $region20: #{tpu_custom_call.1} parent=1 // pred_region
      %s393 = ssub.s32 256, 256
      %394 = vsyncadd [#allocation4], %s393
      %s395 = sshll.u32 [#allocation7], 4
      %s396 = int_to_ptr.vmem [resolvable:$true] %s395
      %401 = dma.vmem_to_hbm [thread:$0]  %s396, 256, %s2, [#allocation4], 128, 128, 8
    $region21: #{tpu_custom_call.1} parent=1 // pred_fallthru
      _
    // Predicated region
    $region22: #{tpu_custom_call.1} parent=1 // pred_check
      _
    $region23: #{tpu_custom_call.1} parent=1 // pred_check_branch
      %403 = sbr.rel (0) target = $region25
    $region24: #{tpu_custom_call.1} parent=1 // pred_region
      %404 = dma.done [#allocation4], 256
    $region25: #{tpu_custom_call.1} parent=1 // pred_fallthru
      _
    %405 = vsyncpa [#allocation3], 1
    %406 = vsyncpa [#allocation6], 1
    %407 = vsyncpa [#allocation4], 1

</llo_original>
